<compile_context>
chip_gen: v5e
topology: v5e:2x2
jax: 0.10.0
libtpu: 0.0.40
codegen_flags: <defaults>
</compile_context>

<pallas_src>
import jax
import jax.numpy as jnp
from jax.experimental import pallas as pl
from jax.experimental.pallas import tpu as pltpu


def _round_up(x, m):
    return (x + m - 1) // m * m


def _linear_kernel(x_ref, w_ref, b_ref, o_ref):
    # x_ref: (tm, K)  w_ref: (K, tn)  b_ref: (1, tn)  o_ref: (tm, tn)
    acc = jnp.dot(x_ref[...], w_ref[...], preferred_element_type=jnp.float32)
    # Bias add stays in f32 on the accumulator; cast once on store.
    o_ref[...] = (acc + b_ref[...]).astype(o_ref.dtype)


def _vmem_capacity_bytes():
    """Physical VMEM of the current chip; conservative default if unknown."""
    try:
        info = pltpu.get_tpu_info()
        cap = getattr(info, "vmem_capacity_bytes", None)
        if cap:
            return int(cap)
    except Exception:
        pass
    return 64 * 1024 * 1024  # v7x-sized fallback (smallest of v5e/v6e/v7x)


def logistic_regression_forward(x, w, b, *, tm=512, weights_dtype=None,
                                out_dtype=None):
    """Forward pass of LogisticRegression.

    x: [N, in_channels]   w: [out_channels, in_channels] (torch Linear weight)
    b: [out_channels]     returns: [N, out_channels] in `out_dtype` (default x.dtype)
    """
    x = jnp.asarray(x)
    w = jnp.asarray(w)
    b = jnp.asarray(b)
    N, K = x.shape
    O, K2 = w.shape
    assert K == K2 and b.shape == (O,)

    out_dtype = jnp.dtype(out_dtype) if out_dtype is not None else x.dtype
    w_dtype = jnp.dtype(weights_dtype) if weights_dtype is not None else w.dtype

    # Only the tiny operands are touched in the wrapper: transpose W to (K, O)
    # and lift the bias to a (1, O) f32 row.  X is passed through untouched.
    w_t = w.T.astype(w_dtype)
    b_row = b.reshape(1, O).astype(jnp.float32)

    x_bytes = x.dtype.itemsize
    w_bytes = jnp.dtype(w_dtype).itemsize
    o_bytes = jnp.dtype(out_dtype).itemsize

    cap = _vmem_capacity_bytes()
    budget = max(16 * 2**20, (cap * 3) // 8)  # ~24 MiB (v7x) / ~48 MiB (v5e/v6e)

    TM_ALIGN = 256  # MXU-native on v6e/v7x, multiple of 128 (v5e) and all packings

    # ---- out_channels tiling: keep the full weight resident unless it's huge.
    if O <= 128 or K * O * w_bytes <= budget // 4:
        tn, o_grid = O, 1
    else:
        tn = max(128, ((budget // 4) // max(K * w_bytes, 1)) // 128 * 128)
        tn = min(tn, _round_up(O, 128))
        o_grid = pl.cdiv(O, tn)
    resident_wb = (o_grid == 1)  # constant index_map -> single-buffer weight/bias

    # ---- row tile: as large as the VMEM budget allows, never below TM_ALIGN,
    #      never larger than needed to cover all rows (8-aligned sublanes).
    n_cover = _round_up(N, 8)
    w_buf = 1 if resident_wb else 2

    def vmem_need(t, wb):
        return (2 * t * (K * x_bytes + tn * o_bytes)   # X-in + out tiles, double-buffered
                + wb * (K * tn * w_bytes + tn * 4))    # weight + bias

    tm = min(_round_up(max(int(tm), TM_ALIGN), TM_ALIGN), n_cover)
    while tm > TM_ALIGN and vmem_need(tm, w_buf) > budget:
        tm = max(TM_ALIGN, _round_up(tm // 2, TM_ALIGN))
    # v7x megacore: prefer >= 2 row-grid steps so both TensorCores get work.
    if n_cover > TM_ALIGN and pl.cdiv(N, tm) < 2:
        tm = max(TM_ALIGN, _round_up(pl.cdiv(N, 2), TM_ALIGN))
    tm = min(tm, n_cover)
    tm = max(8, _round_up(tm, 8))

    grid = (pl.cdiv(N, tm), o_grid)

    # Provision vmem_limit from the conservative (double-buffered) footprint.
    need_cons = vmem_need(tm, 2)
    vmem_limit = int(min((cap * 5) // 8, max(32 * 2**20, 2 * need_cons)))
    vmem_limit = max(vmem_limit, need_cons + (4 << 20))
    vmem_limit = int(min(vmem_limit, (cap * 3) // 4))

    x_spec = pl.BlockSpec((tm, K), lambda i, j: (i, 0))
    out_spec = pl.BlockSpec((tm, tn), lambda i, j: (i, j))

    def build_call(single_buffer_resident):
        if single_buffer_resident:
            w_spec = pl.BlockSpec((K, tn), lambda i, j: (0, j),
                                  pipeline_mode=pl.Buffered(1))
            b_spec = pl.BlockSpec((1, tn), lambda i, j: (0, j),
                                  pipeline_mode=pl.Buffered(1))
        else:
            w_spec = pl.BlockSpec((K, tn), lambda i, j: (0, j))
            b_spec = pl.BlockSpec((1, tn), lambda i, j: (0, j))
        return pl.pallas_call(
            _linear_kernel,
            out_shape=jax.ShapeDtypeStruct((N, O), out_dtype),
            grid_spec=pltpu.PrefetchScalarGridSpec(
                num_scalar_prefetch=0,
                grid=grid,
                in_specs=[x_spec, w_spec, b_spec],
                out_specs=out_spec,
            ),
            compiler_params=pltpu.CompilerParams(
                dimension_semantics=("parallel", "parallel"),
                vmem_limit_bytes=vmem_limit,
            ),
        )

    try:
        return build_call(resident_wb)(x, w_t, b_row)
    except Exception:
        # Fallback: default double-buffering if single-buffered resident
        # operands are not supported by this JAX / Mosaic version.
        return build_call(False)(x, w_t, b_row)


if __name__ == "__main__":
    key = jax.random.PRNGKey(0)
    kx, kw, kb, kx2 = jax.random.split(key, 4)

    # ---- Case 1: small shapes straight from the module spec.
    N, Cin, Cout = 200, 64, 32
    x = jax.random.normal(kx, (N, Cin), dtype=jnp.float32)
    bound = 1.0 / jnp.sqrt(jnp.float32(Cin))
    w = jax.random.uniform(kw, (Cout, Cin), minval=-bound, maxval=bound,
                           dtype=jnp.float32)
    b = jax.random.uniform(kb, (Cout,), minval=-bound, maxval=bound,
                           dtype=jnp.float32)

    ref = jnp.dot(x, w.T, precision=jax.lax.Precision.HIGHEST) + b[None, :]
    out = jax.block_until_ready(logistic_regression_forward(x, w, b))
    assert out.shape == (N, Cout) and out.dtype == jnp.float32
    assert jnp.allclose(out, ref, atol=1e-5, rtol=1e-5)

    # ---- Case 2: ragged N, non-128-multiple K, multi-step row grid
    # (exercises the cdiv ragged-block path and the megacore split).
    N2, Cin2, Cout2 = 1000, 300, 7
    x2 = jax.random.normal(kx2, (N2, Cin2), dtype=jnp.float32)
    bound2 = 1.0 / jnp.sqrt(jnp.float32(Cin2))
    w2 = jax.random.uniform(kw, (Cout2, Cin2), minval=-bound2, maxval=bound2,
                            dtype=jnp.float32)
    b2 = jax.random.uniform(kb, (Cout2,), minval=-bound2, maxval=bound2,
                            dtype=jnp.float32)
    ref2 = jnp.dot(x2, w2.T, precision=jax.lax.Precision.HIGHEST) + b2[None, :]
    out2 = jax.block_until_ready(logistic_regression_forward(x2, w2, b2))
    assert out2.shape == (N2, Cout2)
    assert jnp.allclose(out2, ref2, atol=1e-4, rtol=1e-4)

    # ---- Case 3: bf16 weights (X stays f32, f32 accumulation), looser tol.
    out3 = jax.block_until_ready(
        logistic_regression_forward(x2, w2, b2, weights_dtype=jnp.bfloat16))
    assert out3.shape == (N2, Cout2)
    assert jnp.allclose(out3, ref2, atol=5e-2, rtol=5e-2)

    print("KERNEL_OK")
</pallas_src>

<mosaic_0001>
module attributes {stable_mosaic.version = 11 : i64} {
  func.func @_linear_kernel(%arg0: i32, %arg1: i32, %arg2: memref<200x64xf32, #tpu.memory_space<vmem>>, %arg3: memref<64x32xf32, #tpu.memory_space<vmem>>, %arg4: memref<1x32xf32, #tpu.memory_space<vmem>>, %arg5: memref<200x32xf32, #tpu.memory_space<vmem>>) attributes {dimension_semantics = [#tpu.dimension_semantics<parallel>, #tpu.dimension_semantics<parallel>], iteration_bounds = array<i64: 1, 1>, scalar_prefetch = 0 : i64, scratch_operands = 0 : i64, tpu.core_type = #tpu.core_type<tc>, window_params = [{transform_indices = @transform_0, window_bounds = array<i64: 200, 64>}, {pipeline_mode = #tpu.pipeline_mode<synchronous>, transform_indices = @transform_1, window_bounds = array<i64: 64, 32>}, {pipeline_mode = #tpu.pipeline_mode<synchronous>, transform_indices = @transform_2, window_bounds = array<i64: 1, 32>}, {transform_indices = @transform_3, window_bounds = array<i64: 200, 32>}]} {
    %c0 = arith.constant 0 : index
    %c0_0 = arith.constant 0 : index
    %0 = vector.load %arg2[%c0, %c0_0] : memref<200x64xf32, #tpu.memory_space<vmem>>, vector<200x64xf32>
    %c0_1 = arith.constant 0 : index
    %c0_2 = arith.constant 0 : index
    %1 = vector.load %arg3[%c0_1, %c0_2] : memref<64x32xf32, #tpu.memory_space<vmem>>, vector<64x32xf32>
    %cst = arith.constant dense<0.000000e+00> : vector<200x32xf32>
    %2 = tpu.matmul %0, %1, %cst {dimension_numbers = #tpu.dot_dimension_numbers<[1], [0], [0], [1], [0, 0, 1, 1], [], []>} : vector<200x64xf32>, vector<64x32xf32>, vector<200x32xf32> -> vector<200x32xf32>
    %c0_3 = arith.constant 0 : index
    %c0_4 = arith.constant 0 : index
    %3 = vector.load %arg4[%c0_3, %c0_4] : memref<1x32xf32, #tpu.memory_space<vmem>>, vector<1x32xf32>
    %4 = vector.broadcast %3 : vector<1x32xf32> to vector<200x32xf32>
    %5 = arith.addf %2, %4 : vector<200x32xf32>
    %c0_5 = arith.constant 0 : index
    %c0_6 = arith.constant 0 : index
    %6 = vector.load %arg5[%c0_5, %c0_6] : memref<200x32xf32, #tpu.memory_space<vmem>>, vector<200x32xf32>
    tpu.vector_store %arg5[%c0_5, %c0_6], %5 {strides = array<i32>} : memref<200x32xf32, #tpu.memory_space<vmem>>, vector<200x32xf32>,
    return
  }
  func.func @transform_0(%arg0: i32, %arg1: i32) -> (i32, i32) {
    %c0_i32 = arith.constant 0 : i32
    %c0_i32_0 = arith.constant 0 : i32
    return %arg0, %c0_i32 : i32, i32
  }
  func.func @transform_1(%arg0: i32, %arg1: i32) -> (i32, i32) {
    %c0_i32 = arith.constant 0 : i32
    %c0_i32_0 = arith.constant 0 : i32
    return %c0_i32, %arg1 : i32, i32
  }
  func.func @transform_2(%arg0: i32, %arg1: i32) -> (i32, i32) {
    %c0_i32 = arith.constant 0 : i32
    %c0_i32_0 = arith.constant 0 : i32
    return %c0_i32, %arg1 : i32, i32
  }
  func.func @transform_3(%arg0: i32, %arg1: i32) -> (i32, i32) {
    %c0_i32 = arith.constant 0 : i32
    return %arg0, %arg1 : i32, i32
  }
}

module attributes {stable_mosaic.version = 11 : i64} {
  func.func @_linear_kernel(%arg0: i32, %arg1: i32, %arg2: memref<200x64xf32, #tpu.memory_space<vmem>>, %arg3: memref<64x32xf32, #tpu.memory_space<vmem>>, %arg4: memref<1x32xf32, #tpu.memory_space<vmem>>, %arg5: memref<200x32xf32, #tpu.memory_space<vmem>>) attributes {dimension_semantics = [#tpu.dimension_semantics<parallel>, #tpu.dimension_semantics<parallel>], iteration_bounds = array<i64: 1, 1>, scalar_prefetch = 0 : i64, scratch_operands = 0 : i64, tpu.core_type = #tpu.core_type<tc>, window_params = [{transform_indices = @transform_0, window_bounds = array<i64: 200, 64>}, {transform_indices = @transform_1, window_bounds = array<i64: 64, 32>}, {transform_indices = @transform_2, window_bounds = array<i64: 1, 32>}, {transform_indices = @transform_3, window_bounds = array<i64: 200, 32>}]} {
    %c0 = arith.constant 0 : index
    %c0_0 = arith.constant 0 : index
    %0 = vector.load %arg2[%c0, %c0_0] : memref<200x64xf32, #tpu.memory_space<vmem>>, vector<200x64xf32>
    %c0_1 = arith.constant 0 : index
    %c0_2 = arith.constant 0 : index
    %1 = vector.load %arg3[%c0_1, %c0_2] : memref<64x32xf32, #tpu.memory_space<vmem>>, vector<64x32xf32>
    %cst = arith.constant dense<0.000000e+00> : vector<200x32xf32>
    %2 = tpu.matmul %0, %1, %cst {dimension_numbers = #tpu.dot_dimension_numbers<[1], [0], [0], [1], [0, 0, 1, 1], [], []>} : vector<200x64xf32>, vector<64x32xf32>, vector<200x32xf32> -> vector<200x32xf32>
    %c0_3 = arith.constant 0 : index
    %c0_4 = arith.constant 0 : index
    %3 = vector.load %arg4[%c0_3, %c0_4] : memref<1x32xf32, #tpu.memory_space<vmem>>, vector<1x32xf32>
    %4 = vector.broadcast %3 : vector<1x32xf32> to vector<200x32xf32>
    %5 = arith.addf %2, %4 : vector<200x32xf32>
    %c0_5 = arith.constant 0 : index
    %c0_6 = arith.constant 0 : index
    %6 = vector.load %arg5[%c0_5, %c0_6] : memref<200x32xf32, #tpu.memory_space<vmem>>, vector<200x32xf32>
    tpu.vector_store %arg5[%c0_5, %c0_6], %5 {strides = array<i32>} : memref<200x32xf32, #tpu.memory_space<vmem>>, vector<200x32xf32>,
    return
  }
  func.func @transform_0(%arg0: i32, %arg1: i32) -> (i32, i32) {
    %c0_i32 = arith.constant 0 : i32
    %c0_i32_0 = arith.constant 0 : i32
    return %arg0, %c0_i32 : i32, i32
  }
  func.func @transform_1(%arg0: i32, %arg1: i32) -> (i32, i32) {
    %c0_i32 = arith.constant 0 : i32
    %c0_i32_0 = arith.constant 0 : i32
    return %c0_i32, %arg1 : i32, i32
  }
  func.func @transform_2(%arg0: i32, %arg1: i32) -> (i32, i32) {
    %c0_i32 = arith.constant 0 : i32
    %c0_i32_0 = arith.constant 0 : i32
    return %c0_i32, %arg1 : i32, i32
  }
  func.func @transform_3(%arg0: i32, %arg1: i32) -> (i32, i32) {
    %c0_i32 = arith.constant 0 : i32
    return %arg0, %arg1 : i32, i32
  }
}

</mosaic_0001>

<llo_original>
// kernel: tpu_custom_call.1
$region0: #{tpu_custom_call.1}
  #allocation0 [shape = 'u32[]', space=smem, size = 0x4, offset = 0x4, fixed_abs, tag = 'smem constant byte address 0x4 - core index']
  #allocation1 [shape = 'u32[72,128]{1,0:T(1,128)}', space=vmem, size = 0x9000, scoped, tag = 'internal scratch']
  %s0 = inlined_call_operand.vmem [shape: f32[200,64], index: 0, kind: input, shape index: {}]
  %s1 = inlined_call_operand.vmem [shape: f32[64,32], index: 1, kind: input, shape index: {}]
  %s2 = inlined_call_operand.vmem [shape: f32[1,32], index: 2, kind: input, shape index: {}]
  %s3 = inlined_call_operand.vmem [shape: f32[200,32], index: 3, kind: output, shape index: {}]
  %s4 = sld [smem:[#allocation0]]
  $region22: #{tpu_custom_call.1} parent=0
    _
  %s6 = ssub.s32 1, %s4
  %s7 = scalar_select 0, %s6, %s4
  // Predicated region
  $region2: #{tpu_custom_call.1} parent=0 // pred_check
    _
  $region3: #{tpu_custom_call.1} parent=0 // pred_check_branch
    %9 = sbr.rel (0) target = $region5
  $region4: #{tpu_custom_call.1} parent=0 // pred_region
    _
  $region5: #{tpu_custom_call.1} parent=0 // pred_fallthru
    _
  // Predicated region
  $region6: #{tpu_custom_call.1} parent=0 // pred_check
    _
  $region7: #{tpu_custom_call.1} parent=0 // pred_check_branch
    %11 = sbr.rel (0) target = $region9
  $region8: #{tpu_custom_call.1} parent=0 // pred_region
    _
  $region9: #{tpu_custom_call.1} parent=0 // pred_fallthru
    _
  // Predicated region
  $region10: #{tpu_custom_call.1} parent=0 // pred_check
    _
  $region11: #{tpu_custom_call.1} parent=0 // pred_check_branch
    %13 = sbr.rel (0) target = $region13
  $region12: #{tpu_custom_call.1} parent=0 // pred_region
    _
  $region13: #{tpu_custom_call.1} parent=0 // pred_fallthru
    _
  %v14 = vld [vmem:[%s0] sm:$0xff]
  %v15 = vld [vmem:[%s0 + $0x8] sm:$0xff]
  %v16 = vld [vmem:[%s0 + $0x10] sm:$0xff]
  %v17 = vld [vmem:[%s0 + $0x18] sm:$0xff]
  %v18 = vld [vmem:[%s0 + $0x20] sm:$0xff]
  %v19 = vld [vmem:[%s0 + $0x28] sm:$0xff]
  %v20 = vld [vmem:[%s0 + $0x30] sm:$0xff]
  %v21 = vld [vmem:[%s0 + $0x38] sm:$0xff]
  %v22 = vld [vmem:[%s0 + $0x40] sm:$0xff]
  %v23 = vld [vmem:[%s0 + $0x48] sm:$0xff]
  %v24 = vld [vmem:[%s0 + $0x50] sm:$0xff]
  %v25 = vld [vmem:[%s0 + $0x58] sm:$0xff]
  %v26 = vld [vmem:[%s0 + $0x60] sm:$0xff]
  %v27 = vld [vmem:[%s0 + $0x68] sm:$0xff]
  %v28 = vld [vmem:[%s0 + $0x70] sm:$0xff]
  %v29 = vld [vmem:[%s0 + $0x78] sm:$0xff]
  %v30 = vld [vmem:[%s0 + $0x80] sm:$0xff]
  %v31 = vld [vmem:[%s0 + $0x88] sm:$0xff]
  %v32 = vld [vmem:[%s0 + $0x90] sm:$0xff]
  %v33 = vld [vmem:[%s0 + $0x98] sm:$0xff]
  %v34 = vld [vmem:[%s0 + $0xa0] sm:$0xff]
  %v35 = vld [vmem:[%s0 + $0xa8] sm:$0xff]
  %v36 = vld [vmem:[%s0 + $0xb0] sm:$0xff]
  %v37 = vld [vmem:[%s0 + $0xb8] sm:$0xff]
  %v38 = vld [vmem:[%s0 + $0xc0] sm:$0xff]
  %v39 = vld [vmem:[%s1] sm:$0xff]
  %v40 = vld [vmem:[%s1 + $0x8] sm:$0xff]
  %v41 = vld [vmem:[%s1 + $0x10] sm:$0xff]
  %v42 = vld [vmem:[%s1 + $0x18] sm:$0xff]
  %v43 = vld [vmem:[%s1 + $0x20] sm:$0xff]
  %v44 = vld [vmem:[%s1 + $0x28] sm:$0xff]
  %v45 = vld [vmem:[%s1 + $0x30] sm:$0xff]
  %v46 = vld [vmem:[%s1 + $0x38] sm:$0xff]
  %v47 = vld [vmem:[%s2] sm:$0x1]
  %v49 = vperm.slane %v47, 0
  %vm51 = vcmask 523264
  %v53 = vsel %vm51, %v14, 0
  %v56 = vsel %vm51, %v15, 0
  %v59 = vsel %vm51, %v16, 0
  %v62 = vsel %vm51, %v17, 0
  %v65 = vsel %vm51, %v18, 0
  %v68 = vsel %vm51, %v19, 0
  %v71 = vsel %vm51, %v20, 0
  %v74 = vsel %vm51, %v21, 0
  %v77 = vsel %vm51, %v22, 0
  %v80 = vsel %vm51, %v23, 0
  %v83 = vsel %vm51, %v24, 0
  %v86 = vsel %vm51, %v25, 0
  %v89 = vsel %vm51, %v26, 0
  %v92 = vsel %vm51, %v27, 0
  %v95 = vsel %vm51, %v28, 0
  %v98 = vsel %vm51, %v29, 0
  %v101 = vsel %vm51, %v30, 0
  %v104 = vsel %vm51, %v31, 0
  %v107 = vsel %vm51, %v32, 0
  %v110 = vsel %vm51, %v33, 0
  %v113 = vsel %vm51, %v34, 0
  %v116 = vsel %vm51, %v35, 0
  %v119 = vsel %vm51, %v36, 0
  %v122 = vsel %vm51, %v37, 0
  %v125 = vsel %vm51, %v38, 0
  %127 = vmatpush.msra.mxu0 0.0
  %128 = vmatpush.msra.mxu0 0.0
  %129 = vmatpush.msra.mxu0 0.0
  %130 = vmatpush.msra.mxu0 0.0
  %131 = vmatpush.msra.mxu0 0.0
  %132 = vmatpush.msra.mxu0 0.0
  %133 = vmatpush.msra.mxu0 0.0
  %134 = vmatpush.msra.mxu0 0.0
  %135 = vmatpush.msra.mxu0 %v46
  %136 = vmatpush.msra.mxu0 %v45
  %137 = vmatpush.msra.mxu0 %v44
  %138 = vmatpush.msra.mxu0 %v43
  %139 = vmatpush.msra.mxu0 %v42
  %140 = vmatpush.msra.mxu0 %v41
  %141 = vmatpush.msra.mxu0 %v40
  %142 = vmatpush.msra.mxu0 %v39
  %143 = vmatmul.f32.gmra.mxu0 %v53
  %v144 = vpop.f32.mrf.mxu0
  %v145 = vadd.f32 %v49, %v144
  %146 = vmatmul.f32.gmra.mxu0 %v56
  %v147 = vpop.f32.mrf.mxu0
  %v148 = vadd.f32 %v49, %v147
  %149 = vmatmul.f32.gmra.mxu0 %v59
  %v150 = vpop.f32.mrf.mxu0
  %v151 = vadd.f32 %v49, %v150
  %152 = vmatmul.f32.gmra.mxu0 %v62
  %v153 = vpop.f32.mrf.mxu0
  %v154 = vadd.f32 %v49, %v153
  %155 = vmatmul.f32.gmra.mxu0 %v65
  %v156 = vpop.f32.mrf.mxu0
  %v157 = vadd.f32 %v49, %v156
  %158 = vmatmul.f32.gmra.mxu0 %v68
  %v159 = vpop.f32.mrf.mxu0
  %v160 = vadd.f32 %v49, %v159
  %161 = vmatmul.f32.gmra.mxu0 %v71
  %v162 = vpop.f32.mrf.mxu0
  %v163 = vadd.f32 %v49, %v162
  %164 = vmatmul.f32.gmra.mxu0 %v74
  %v165 = vpop.f32.mrf.mxu0
  %v166 = vadd.f32 %v49, %v165
  %167 = vmatmul.f32.gmra.mxu0 %v77
  %v168 = vpop.f32.mrf.mxu0
  %v169 = vadd.f32 %v49, %v168
  %170 = vmatmul.f32.gmra.mxu0 %v80
  %v171 = vpop.f32.mrf.mxu0
  %v172 = vadd.f32 %v49, %v171
  %173 = vmatmul.f32.gmra.mxu0 %v83
  %v174 = vpop.f32.mrf.mxu0
  %v175 = vadd.f32 %v49, %v174
  %176 = vmatmul.f32.gmra.mxu0 %v86
  %v177 = vpop.f32.mrf.mxu0
  %v178 = vadd.f32 %v49, %v177
  %179 = vmatmul.f32.gmra.mxu0 %v89
  %v180 = vpop.f32.mrf.mxu0
  %v181 = vadd.f32 %v49, %v180
  %182 = vmatmul.f32.gmra.mxu0 %v92
  %v183 = vpop.f32.mrf.mxu0
  %v184 = vadd.f32 %v49, %v183
  %185 = vmatmul.f32.gmra.mxu0 %v95
  %v186 = vpop.f32.mrf.mxu0
  %v187 = vadd.f32 %v49, %v186
  %188 = vmatmul.f32.gmra.mxu0 %v98
  %v189 = vpop.f32.mrf.mxu0
  %v190 = vadd.f32 %v49, %v189
  %191 = vmatmul.f32.gmra.mxu0 %v101
  %v192 = vpop.f32.mrf.mxu0
  %v193 = vadd.f32 %v49, %v192
  %194 = vmatmul.f32.gmra.mxu0 %v104
  %v195 = vpop.f32.mrf.mxu0
  %v196 = vadd.f32 %v49, %v195
  %197 = vmatmul.f32.gmra.mxu0 %v107
  %v198 = vpop.f32.mrf.mxu0
  %v199 = vadd.f32 %v49, %v198
  %200 = vmatmul.f32.gmra.mxu0 %v110
  %v201 = vpop.f32.mrf.mxu0
  %v202 = vadd.f32 %v49, %v201
  %203 = vmatmul.f32.gmra.mxu0 %v113
  %v204 = vpop.f32.mrf.mxu0
  %v205 = vadd.f32 %v49, %v204
  %206 = vmatmul.f32.gmra.mxu0 %v116
  %v207 = vpop.f32.mrf.mxu0
  %v208 = vadd.f32 %v49, %v207
  %209 = vmatmul.f32.gmra.mxu0 %v119
  %v210 = vpop.f32.mrf.mxu0
  %v211 = vadd.f32 %v49, %v210
  %212 = vmatmul.f32.gmra.mxu0 %v122
  %v213 = vpop.f32.mrf.mxu0
  %v214 = vadd.f32 %v49, %v213
  %215 = vmatmul.f32.gmra.mxu0 %v125
  %v216 = vpop.f32.mrf.mxu0
  %v217 = vadd.f32 %v49, %v216
  %218 = vdwg.mxu0
  %vm219 = vcmask 261120
  %220 = vst.msk [vmem:[%s3] sm:$0xff] %vm219, %v145
  %221 = vst.msk [vmem:[%s3 + $0x8] sm:$0xff] %vm219, %v148
  %222 = vst.msk [vmem:[%s3 + $0x10] sm:$0xff] %vm219, %v151
  %223 = vst.msk [vmem:[%s3 + $0x18] sm:$0xff] %vm219, %v154
  %224 = vst.msk [vmem:[%s3 + $0x20] sm:$0xff] %vm219, %v157
  %225 = vst.msk [vmem:[%s3 + $0x28] sm:$0xff] %vm219, %v160
  %226 = vst.msk [vmem:[%s3 + $0x30] sm:$0xff] %vm219, %v163
  %227 = vst.msk [vmem:[%s3 + $0x38] sm:$0xff] %vm219, %v166
  %228 = vst.msk [vmem:[%s3 + $0x40] sm:$0xff] %vm219, %v169
  %229 = vst.msk [vmem:[%s3 + $0x48] sm:$0xff] %vm219, %v172
  %230 = vst.msk [vmem:[%s3 + $0x50] sm:$0xff] %vm219, %v175
  %231 = vst.msk [vmem:[%s3 + $0x58] sm:$0xff] %vm219, %v178
  %232 = vst.msk [vmem:[%s3 + $0x60] sm:$0xff] %vm219, %v181
  %233 = vst.msk [vmem:[%s3 + $0x68] sm:$0xff] %vm219, %v184
  %234 = vst.msk [vmem:[%s3 + $0x70] sm:$0xff] %vm219, %v187
  %235 = vst.msk [vmem:[%s3 + $0x78] sm:$0xff] %vm219, %v190
  %236 = vst.msk [vmem:[%s3 + $0x80] sm:$0xff] %vm219, %v193
  %237 = vst.msk [vmem:[%s3 + $0x88] sm:$0xff] %vm219, %v196
  %238 = vst.msk [vmem:[%s3 + $0x90] sm:$0xff] %vm219, %v199
  %239 = vst.msk [vmem:[%s3 + $0x98] sm:$0xff] %vm219, %v202
  %240 = vst.msk [vmem:[%s3 + $0xa0] sm:$0xff] %vm219, %v205
  %241 = vst.msk [vmem:[%s3 + $0xa8] sm:$0xff] %vm219, %v208
  %242 = vst.msk [vmem:[%s3 + $0xb0] sm:$0xff] %vm219, %v211
  %243 = vst.msk [vmem:[%s3 + $0xb8] sm:$0xff] %vm219, %v214
  %244 = vst.msk [vmem:[%s3 + $0xc0] sm:$0xff] %vm219, %v217
  // Predicated region
  $region14: #{tpu_custom_call.1} parent=0 // pred_check
    _
  $region15: #{tpu_custom_call.1} parent=0 // pred_check_branch
    %246 = sbr.rel (0) target = $region17
  $region16: #{tpu_custom_call.1} parent=0 // pred_region
    _
  $region17: #{tpu_custom_call.1} parent=0 // pred_fallthru
    _
  // Predicated region
  $region18: #{tpu_custom_call.1} parent=0 // pred_check
    _
  $region19: #{tpu_custom_call.1} parent=0 // pred_check_branch
    %248 = sbr.rel (0) target = $region21
  $region20: #{tpu_custom_call.1} parent=0 // pred_region
    _
  $region21: #{tpu_custom_call.1} parent=0 // pred_fallthru
    _

// kernel: tpu_custom_call.1
$region0: #{tpu_custom_call.1}
  #allocation0 [shape = 'u32[]', space=smem, size = 0x4, offset = 0x4, fixed_abs, tag = 'smem constant byte address 0x4 - core index']
  #allocation1 [shape = 'u32[72,128]{1,0:T(1,128)}', space=vmem, size = 0x9000, scoped, tag = 'internal scratch']
  %s0 = inlined_call_operand.vmem [shape: f32[200,64], index: 0, kind: input, shape index: {}]
  %s1 = inlined_call_operand.vmem [shape: f32[64,32], index: 1, kind: input, shape index: {}]
  %s2 = inlined_call_operand.vmem [shape: f32[1,32], index: 2, kind: input, shape index: {}]
  %s3 = inlined_call_operand.vmem [shape: f32[200,32], index: 3, kind: output, shape index: {}]
  %s4 = sld [smem:[#allocation0]]
  $region22: #{tpu_custom_call.1} parent=0
    _
  %s6 = ssub.s32 1, %s4
  %s7 = scalar_select 0, %s6, %s4
  // Predicated region
  $region2: #{tpu_custom_call.1} parent=0 // pred_check
    _
  $region3: #{tpu_custom_call.1} parent=0 // pred_check_branch
    %9 = sbr.rel (0) target = $region5
  $region4: #{tpu_custom_call.1} parent=0 // pred_region
    _
  $region5: #{tpu_custom_call.1} parent=0 // pred_fallthru
    _
  // Predicated region
  $region6: #{tpu_custom_call.1} parent=0 // pred_check
    _
  $region7: #{tpu_custom_call.1} parent=0 // pred_check_branch
    %11 = sbr.rel (0) target = $region9
  $region8: #{tpu_custom_call.1} parent=0 // pred_region
    _
  $region9: #{tpu_custom_call.1} parent=0 // pred_fallthru
    _
  // Predicated region
  $region10: #{tpu_custom_call.1} parent=0 // pred_check
    _
  $region11: #{tpu_custom_call.1} parent=0 // pred_check_branch
    %13 = sbr.rel (0) target = $region13
  $region12: #{tpu_custom_call.1} parent=0 // pred_region
    _
  $region13: #{tpu_custom_call.1} parent=0 // pred_fallthru
    _
  %v14 = vld [vmem:[%s0] sm:$0xff]
  %v15 = vld [vmem:[%s0 + $0x8] sm:$0xff]
  %v16 = vld [vmem:[%s0 + $0x10] sm:$0xff]
  %v17 = vld [vmem:[%s0 + $0x18] sm:$0xff]
  %v18 = vld [vmem:[%s0 + $0x20] sm:$0xff]
  %v19 = vld [vmem:[%s0 + $0x28] sm:$0xff]
  %v20 = vld [vmem:[%s0 + $0x30] sm:$0xff]
  %v21 = vld [vmem:[%s0 + $0x38] sm:$0xff]
  %v22 = vld [vmem:[%s0 + $0x40] sm:$0xff]
  %v23 = vld [vmem:[%s0 + $0x48] sm:$0xff]
  %v24 = vld [vmem:[%s0 + $0x50] sm:$0xff]
  %v25 = vld [vmem:[%s0 + $0x58] sm:$0xff]
  %v26 = vld [vmem:[%s0 + $0x60] sm:$0xff]
  %v27 = vld [vmem:[%s0 + $0x68] sm:$0xff]
  %v28 = vld [vmem:[%s0 + $0x70] sm:$0xff]
  %v29 = vld [vmem:[%s0 + $0x78] sm:$0xff]
  %v30 = vld [vmem:[%s0 + $0x80] sm:$0xff]
  %v31 = vld [vmem:[%s0 + $0x88] sm:$0xff]
  %v32 = vld [vmem:[%s0 + $0x90] sm:$0xff]
  %v33 = vld [vmem:[%s0 + $0x98] sm:$0xff]
  %v34 = vld [vmem:[%s0 + $0xa0] sm:$0xff]
  %v35 = vld [vmem:[%s0 + $0xa8] sm:$0xff]
  %v36 = vld [vmem:[%s0 + $0xb0] sm:$0xff]
  %v37 = vld [vmem:[%s0 + $0xb8] sm:$0xff]
  %v38 = vld [vmem:[%s0 + $0xc0] sm:$0xff]
  %v39 = vld [vmem:[%s1] sm:$0xff]
  %v40 = vld [vmem:[%s1 + $0x8] sm:$0xff]
  %v41 = vld [vmem:[%s1 + $0x10] sm:$0xff]
  %v42 = vld [vmem:[%s1 + $0x18] sm:$0xff]
  %v43 = vld [vmem:[%s1 + $0x20] sm:$0xff]
  %v44 = vld [vmem:[%s1 + $0x28] sm:$0xff]
  %v45 = vld [vmem:[%s1 + $0x30] sm:$0xff]
  %v46 = vld [vmem:[%s1 + $0x38] sm:$0xff]
  %v47 = vld [vmem:[%s2] sm:$0x1]
  %v49 = vperm.slane %v47, 0
  %vm51 = vcmask 523264
  %v53 = vsel %vm51, %v14, 0
  %v56 = vsel %vm51, %v15, 0
  %v59 = vsel %vm51, %v16, 0
  %v62 = vsel %vm51, %v17, 0
  %v65 = vsel %vm51, %v18, 0
  %v68 = vsel %vm51, %v19, 0
  %v71 = vsel %vm51, %v20, 0
  %v74 = vsel %vm51, %v21, 0
  %v77 = vsel %vm51, %v22, 0
  %v80 = vsel %vm51, %v23, 0
  %v83 = vsel %vm51, %v24, 0
  %v86 = vsel %vm51, %v25, 0
  %v89 = vsel %vm51, %v26, 0
  %v92 = vsel %vm51, %v27, 0
  %v95 = vsel %vm51, %v28, 0
  %v98 = vsel %vm51, %v29, 0
  %v101 = vsel %vm51, %v30, 0
  %v104 = vsel %vm51, %v31, 0
  %v107 = vsel %vm51, %v32, 0
  %v110 = vsel %vm51, %v33, 0
  %v113 = vsel %vm51, %v34, 0
  %v116 = vsel %vm51, %v35, 0
  %v119 = vsel %vm51, %v36, 0
  %v122 = vsel %vm51, %v37, 0
  %v125 = vsel %vm51, %v38, 0
  %127 = vmatpush.msra.mxu0 0.0
  %128 = vmatpush.msra.mxu0 0.0
  %129 = vmatpush.msra.mxu0 0.0
  %130 = vmatpush.msra.mxu0 0.0
  %131 = vmatpush.msra.mxu0 0.0
  %132 = vmatpush.msra.mxu0 0.0
  %133 = vmatpush.msra.mxu0 0.0
  %134 = vmatpush.msra.mxu0 0.0
  %135 = vmatpush.msra.mxu0 %v46
  %136 = vmatpush.msra.mxu0 %v45
  %137 = vmatpush.msra.mxu0 %v44
  %138 = vmatpush.msra.mxu0 %v43
  %139 = vmatpush.msra.mxu0 %v42
  %140 = vmatpush.msra.mxu0 %v41
  %141 = vmatpush.msra.mxu0 %v40
  %142 = vmatpush.msra.mxu0 %v39
  %143 = vmatmul.f32.gmra.mxu0 %v53
  %v144 = vpop.f32.mrf.mxu0
  %v145 = vadd.f32 %v49, %v144
  %146 = vmatmul.f32.gmra.mxu0 %v56
  %v147 = vpop.f32.mrf.mxu0
  %v148 = vadd.f32 %v49, %v147
  %149 = vmatmul.f32.gmra.mxu0 %v59
  %v150 = vpop.f32.mrf.mxu0
  %v151 = vadd.f32 %v49, %v150
  %152 = vmatmul.f32.gmra.mxu0 %v62
  %v153 = vpop.f32.mrf.mxu0
  %v154 = vadd.f32 %v49, %v153
  %155 = vmatmul.f32.gmra.mxu0 %v65
  %v156 = vpop.f32.mrf.mxu0
  %v157 = vadd.f32 %v49, %v156
  %158 = vmatmul.f32.gmra.mxu0 %v68
  %v159 = vpop.f32.mrf.mxu0
  %v160 = vadd.f32 %v49, %v159
  %161 = vmatmul.f32.gmra.mxu0 %v71
  %v162 = vpop.f32.mrf.mxu0
  %v163 = vadd.f32 %v49, %v162
  %164 = vmatmul.f32.gmra.mxu0 %v74
  %v165 = vpop.f32.mrf.mxu0
  %v166 = vadd.f32 %v49, %v165
  %167 = vmatmul.f32.gmra.mxu0 %v77
  %v168 = vpop.f32.mrf.mxu0
  %v169 = vadd.f32 %v49, %v168
  %170 = vmatmul.f32.gmra.mxu0 %v80
  %v171 = vpop.f32.mrf.mxu0
  %v172 = vadd.f32 %v49, %v171
  %173 = vmatmul.f32.gmra.mxu0 %v83
  %v174 = vpop.f32.mrf.mxu0
  %v175 = vadd.f32 %v49, %v174
  %176 = vmatmul.f32.gmra.mxu0 %v86
  %v177 = vpop.f32.mrf.mxu0
  %v178 = vadd.f32 %v49, %v177
  %179 = vmatmul.f32.gmra.mxu0 %v89
  %v180 = vpop.f32.mrf.mxu0
  %v181 = vadd.f32 %v49, %v180
  %182 = vmatmul.f32.gmra.mxu0 %v92
  %v183 = vpop.f32.mrf.mxu0
  %v184 = vadd.f32 %v49, %v183
  %185 = vmatmul.f32.gmra.mxu0 %v95
  %v186 = vpop.f32.mrf.mxu0
  %v187 = vadd.f32 %v49, %v186
  %188 = vmatmul.f32.gmra.mxu0 %v98
  %v189 = vpop.f32.mrf.mxu0
  %v190 = vadd.f32 %v49, %v189
  %191 = vmatmul.f32.gmra.mxu0 %v101
  %v192 = vpop.f32.mrf.mxu0
  %v193 = vadd.f32 %v49, %v192
  %194 = vmatmul.f32.gmra.mxu0 %v104
  %v195 = vpop.f32.mrf.mxu0
  %v196 = vadd.f32 %v49, %v195
  %197 = vmatmul.f32.gmra.mxu0 %v107
  %v198 = vpop.f32.mrf.mxu0
  %v199 = vadd.f32 %v49, %v198
  %200 = vmatmul.f32.gmra.mxu0 %v110
  %v201 = vpop.f32.mrf.mxu0
  %v202 = vadd.f32 %v49, %v201
  %203 = vmatmul.f32.gmra.mxu0 %v113
  %v204 = vpop.f32.mrf.mxu0
  %v205 = vadd.f32 %v49, %v204
  %206 = vmatmul.f32.gmra.mxu0 %v116
  %v207 = vpop.f32.mrf.mxu0
  %v208 = vadd.f32 %v49, %v207
  %209 = vmatmul.f32.gmra.mxu0 %v119
  %v210 = vpop.f32.mrf.mxu0
  %v211 = vadd.f32 %v49, %v210
  %212 = vmatmul.f32.gmra.mxu0 %v122
  %v213 = vpop.f32.mrf.mxu0
  %v214 = vadd.f32 %v49, %v213
  %215 = vmatmul.f32.gmra.mxu0 %v125
  %v216 = vpop.f32.mrf.mxu0
  %v217 = vadd.f32 %v49, %v216
  %218 = vdwg.mxu0
  %vm219 = vcmask 261120
  %220 = vst.msk [vmem:[%s3] sm:$0xff] %vm219, %v145
  %221 = vst.msk [vmem:[%s3 + $0x8] sm:$0xff] %vm219, %v148
  %222 = vst.msk [vmem:[%s3 + $0x10] sm:$0xff] %vm219, %v151
  %223 = vst.msk [vmem:[%s3 + $0x18] sm:$0xff] %vm219, %v154
  %224 = vst.msk [vmem:[%s3 + $0x20] sm:$0xff] %vm219, %v157
  %225 = vst.msk [vmem:[%s3 + $0x28] sm:$0xff] %vm219, %v160
  %226 = vst.msk [vmem:[%s3 + $0x30] sm:$0xff] %vm219, %v163
  %227 = vst.msk [vmem:[%s3 + $0x38] sm:$0xff] %vm219, %v166
  %228 = vst.msk [vmem:[%s3 + $0x40] sm:$0xff] %vm219, %v169
  %229 = vst.msk [vmem:[%s3 + $0x48] sm:$0xff] %vm219, %v172
  %230 = vst.msk [vmem:[%s3 + $0x50] sm:$0xff] %vm219, %v175
  %231 = vst.msk [vmem:[%s3 + $0x58] sm:$0xff] %vm219, %v178
  %232 = vst.msk [vmem:[%s3 + $0x60] sm:$0xff] %vm219, %v181
  %233 = vst.msk [vmem:[%s3 + $0x68] sm:$0xff] %vm219, %v184
  %234 = vst.msk [vmem:[%s3 + $0x70] sm:$0xff] %vm219, %v187
  %235 = vst.msk [vmem:[%s3 + $0x78] sm:$0xff] %vm219, %v190
  %236 = vst.msk [vmem:[%s3 + $0x80] sm:$0xff] %vm219, %v193
  %237 = vst.msk [vmem:[%s3 + $0x88] sm:$0xff] %vm219, %v196
  %238 = vst.msk [vmem:[%s3 + $0x90] sm:$0xff] %vm219, %v199
  %239 = vst.msk [vmem:[%s3 + $0x98] sm:$0xff] %vm219, %v202
  %240 = vst.msk [vmem:[%s3 + $0xa0] sm:$0xff] %vm219, %v205
  %241 = vst.msk [vmem:[%s3 + $0xa8] sm:$0xff] %vm219, %v208
  %242 = vst.msk [vmem:[%s3 + $0xb0] sm:$0xff] %vm219, %v211
  %243 = vst.msk [vmem:[%s3 + $0xb8] sm:$0xff] %vm219, %v214
  %244 = vst.msk [vmem:[%s3 + $0xc0] sm:$0xff] %vm219, %v217
  // Predicated region
  $region14: #{tpu_custom_call.1} parent=0 // pred_check
    _
  $region15: #{tpu_custom_call.1} parent=0 // pred_check_branch
    %246 = sbr.rel (0) target = $region17
  $region16: #{tpu_custom_call.1} parent=0 // pred_region
    _
  $region17: #{tpu_custom_call.1} parent=0 // pred_fallthru
    _
  // Predicated region
  $region18: #{tpu_custom_call.1} parent=0 // pred_check
    _
  $region19: #{tpu_custom_call.1} parent=0 // pred_check_branch
    %248 = sbr.rel (0) target = $region21
  $region20: #{tpu_custom_call.1} parent=0 // pred_region
    _
  $region21: #{tpu_custom_call.1} parent=0 // pred_fallthru
    _

</llo_original>
